<compile_context>
chip_gen: v5e
topology: v5e:2x2
jax: 0.10.0
libtpu: 0.0.40
codegen_flags: <defaults>
</compile_context>

<pallas_src>
import numpy as np
import jax
import jax.numpy as jnp
from jax.experimental import pallas as pl
from jax.experimental.pallas import tpu as pltpu

NUM_HARMONICS = 50

A_N_INIT = np.array([
    22.52177631, -14.36855749, -15.46172335, -13.80045632, -7.25623712,
    -3.29460343, -0.89431335, -0.43939094, -0.54756908, -0.77002806,
    -0.7294812, -0.73489638, -0.62724951, -0.57507896, -0.34530626,
    -0.21673895, -0.20965273, -0.26026577, -0.20969586, -0.24222277,
    -0.17879291, -0.11930541, -0.15606102, -0.15482003, -0.12276921,
    -0.17289476, -0.07536781, -0.06925928, -0.08416083, -0.05711419,
    -0.04268535, -0.09427819, -0.07077185, -0.06556709, -0.03610009,
    -0.02205418, -0.06557365, -0.06891148, -0.03277604, -0.02013158,
    -0.02870531, -0.04042139, -0.02883675, -0.0260839, -0.02797781,
    -0.02348708, -0.02043181, -0.02118805, -0.02051532, -0.01986274,
], dtype=np.float32)

B_N_INIT = np.array([
    -3.54578831e-15, 1.77289416e-15, 2.65934123e-15, 5.31868247e-15,
    5.0970707e-15, 5.54029424e-15, 3.60119125e-15, 1.10805885e-15,
    0.0, 0.0, 2.10531181e-15, 9.08608255e-15, -2.00004622e-14,
    -1.10805885e-15, 5.01396628e-15, -1.55128239e-15, -1.93910298e-15,
    1.10805885e-16, -2.71474418e-15, -4.3214295e-15, -8.44894871e-15,
    -9.97252962e-15, -2.30199226e-14, 4.65384716e-15, 5.31868247e-15,
    -1.10805885e-15, 8.08882958e-15, 2.93635595e-15, 6.86996485e-15,
    2.99175889e-15, 1.66208827e-15, -1.86153886e-14, -9.69551491e-15,
    3.93360891e-15, -2.29922211e-15, 1.39061385e-14, -1.56402506e-13,
    -1.4404765e-15, 1.02218429e-14, -1.77843445e-14, 5.54029424e-15,
    1.93356269e-14, 1.1523812e-14, 1.20778414e-14, 1.80890607e-14,
    -6.92536779e-15, -6.23283102e-15, 1.24213397e-13, 5.64001953e-14,
    2.20503711e-14,
], dtype=np.float32)

A_0_INIT = np.array([42.8742], dtype=np.float32)


# ----------------------------- helpers --------------------------------------

def _ceil_div(a, b):
    return -(-a // b)


def _ceil_to(v, m):
    return _ceil_div(v, m) * m


def _vmem_budget():
    """Generation-aware VMEM sizing.

    Returns (vmem_limit_bytes, pair_budget_bytes) where pair_budget is the
    byte budget for ONE (input tile + output tile) pair.  Pipeline footprint
    is ~2 * pair (double-buffering) + the tiny filter tile.
    """
    try:
        cap = int(pltpu.get_tpu_info().vmem_capacity_bytes)   # v7x: 64 MiB/TC
    except Exception:
        cap = 64 * 1024 * 1024                                # conservative
    # Scoped limit we request: half of physical (v7x: 32 MiB, v5e/v6e: 64 MiB).
    vmem_limit = min(cap // 2, 64 * 1024 * 1024)
    # 2 * pair_budget must fit under the scoped limit with ~25% headroom;
    # keep individual tiles in the measured 2-4 MiB sweet spot.
    pair_budget = min((vmem_limit * 3 // 4) // 2, 8 * 1024 * 1024)
    return vmem_limit, pair_budget


def _choose_row_tile(n_rows, d_pad, x_itemsize, out_itemsize, pair_budget):
    """Pick a sublane-aligned row-tile size from a byte budget + grid shaping."""
    sub = max(8, 32 // min(x_itemsize, out_itemsize))     # f32: 8, bf16: 16
    bytes_per_row = d_pad * (x_itemsize + out_itemsize)
    rt = max(sub, (pair_budget // bytes_per_row) // sub * sub)
    if rt >= n_rows:
        # Small-R: split into at least 2 tiles so both v7x TensorCores get
        # work and the DMA/compute pipeline can overlap at all.
        if n_rows >= 2 * sub:
            rt = _ceil_to(_ceil_div(n_rows, 2), sub)
        else:
            rt = n_rows                                    # tiny: one full tile
    else:
        steps = _ceil_div(n_rows, rt)
        if steps % 2 == 1 and steps > 1:
            # Prefer an even number of grid steps for balanced megacore split.
            rt = _ceil_to(_ceil_div(n_rows, steps + 1), sub)
    return rt


# ----------------------------- kernel ---------------------------------------

def apply_filter_kernel(filt_ref, x_ref, o_ref):
    # Memory-bound broadcast multiply: filt_ref (1, Dp), x_ref/o_ref (rt, Dp).
    o_ref[...] = (x_ref[...] * filt_ref[...]).astype(o_ref.dtype)


# ----------------------------- wrapper ---------------------------------------

def fourier_filter(x, a_0, a_n, b_n, frequencies, *, donate_x=False):
    """x: (B, P, D); returns x * filter_1d broadcast over (B, P) — same shape."""
    B, P, D = x.shape
    R = B * P
    out_dtype = jnp.promote_types(x.dtype, jnp.float32)

    # --- filter build (off the hot path, ~100*D transcendentals): plain jnp ---
    n = jnp.arange(1, NUM_HARMONICS + 1, dtype=jnp.float32)[:, None]        # (H,1)
    ang = jnp.float32(2.0 * np.pi) * n * frequencies[None, :].astype(jnp.float32)
    filt_1d = (a_0.astype(jnp.float32)
               + jnp.sum(a_n.astype(jnp.float32)[:, None] * jnp.cos(ang)
                         + b_n.astype(jnp.float32)[:, None] * jnp.sin(ang),
                         axis=0))                                            # (D,)

    # --- lane-dense padding of the detector axis to a multiple of 128 --------
    D_pad = _ceil_to(D, 128)
    x2 = x.reshape(R, D)
    if D_pad != D:
        x2 = jnp.pad(x2, ((0, 0), (0, D_pad - D)))
        filt_1d = jnp.pad(filt_1d, (0, D_pad - D))
    filt2d = filt_1d.reshape(1, D_pad)

    # --- tile sizing / VMEM limits -------------------------------------------
    vmem_limit, pair_budget = _vmem_budget()
    x_isz = jnp.dtype(x2.dtype).itemsize
    o_isz = jnp.dtype(out_dtype).itemsize
    rt = _choose_row_tile(R, D_pad, x_isz, o_isz, pair_budget)
    grid = (pl.cdiv(R, rt),)            # partial last tile is OK (elementwise)

    io_aliases = {}
    if donate_x and x2.dtype == out_dtype:
        io_aliases = {1: 0}             # donate x2 buffer to the output

    out2 = pl.pallas_call(
        apply_filter_kernel,
        out_shape=jax.ShapeDtypeStruct((R, D_pad), out_dtype),
        grid=grid,
        in_specs=[
            pl.BlockSpec((1, D_pad), lambda i: (0, 0)),          # filter (resident)
            pl.BlockSpec((rt, D_pad), lambda i: (i, 0)),         # x tile
        ],
        out_specs=pl.BlockSpec((rt, D_pad), lambda i: (i, 0)),
        compiler_params=pltpu.CompilerParams(
            dimension_semantics=("parallel",),                   # megacore shard
            vmem_limit_bytes=vmem_limit),
        cost_estimate=pl.CostEstimate(
            flops=R * D_pad,
            transcendentals=0,
            bytes_accessed=R * D_pad * (x_isz + o_isz) + D_pad * 4),
        input_output_aliases=io_aliases,
    )(filt2d, x2)

    if D_pad != D:
        out2 = out2[:, :D]
    return out2.reshape(B, P, D)


# ----------------------------- reference & test -------------------------------

def fourier_filter_reference(x, a_0, a_n, b_n, frequencies):
    n = jnp.arange(1, NUM_HARMONICS + 1, dtype=jnp.float32)[:, None]
    ang = 2.0 * jnp.pi * n * frequencies[None, :]
    filt_1d = a_0 + jnp.sum(a_n[:, None] * jnp.cos(ang)
                            + b_n[:, None] * jnp.sin(ang), axis=0)
    return x * filt_1d[None, None, :]


if __name__ == "__main__":
    batch = 2
    number_of_projections = 16
    num_detectors = 128

    key = jax.random.PRNGKey(0)
    x = jax.random.normal(key, (batch, number_of_projections, num_detectors),
                          dtype=jnp.float32)

    frequencies = jnp.fft.fftfreq(num_detectors).astype(jnp.float32)
    a_0 = jnp.asarray(A_0_INIT)
    a_n = jnp.asarray(A_N_INIT)
    b_n = jnp.asarray(B_N_INIT)

    out = fourier_filter(x, a_0, a_n, b_n, frequencies)
    out = jax.block_until_ready(out)

    ref = fourier_filter_reference(x, a_0, a_n, b_n, frequencies)
    assert out.shape == x.shape, (out.shape, x.shape)
    assert out.dtype == x.dtype, (out.dtype, x.dtype)
    assert jnp.allclose(out, ref, rtol=1e-4, atol=1e-4), "mismatch vs reference"

    print("KERNEL_OK")
</pallas_src>

<mosaic_0001>
module attributes {stable_mosaic.version = 11 : i64} {
  func.func @apply_filter_kernel(%arg0: i32, %arg1: memref<1x128xf32, #tpu.memory_space<vmem>>, %arg2: memref<16x128xf32, #tpu.memory_space<vmem>>, %arg3: memref<16x128xf32, #tpu.memory_space<vmem>>) attributes {dimension_semantics = [#tpu.dimension_semantics<parallel>], iteration_bounds = array<i64: 2>, scalar_prefetch = 0 : i64, scratch_operands = 0 : i64, tpu.core_type = #tpu.core_type<tc>, window_params = [{pipeline_mode = #tpu.pipeline_mode<synchronous>, transform_indices = @transform_0, window_bounds = array<i64: 1, 128>}, {transform_indices = @transform_1, window_bounds = array<i64: 16, 128>}, {transform_indices = @transform_2, window_bounds = array<i64: 16, 128>}]} {
    %c0 = arith.constant 0 : index
    %c0_0 = arith.constant 0 : index
    %0 = vector.load %arg2[%c0, %c0_0] : memref<16x128xf32, #tpu.memory_space<vmem>>, vector<16x128xf32>
    %c0_1 = arith.constant 0 : index
    %c0_2 = arith.constant 0 : index
    %1 = vector.load %arg1[%c0_1, %c0_2] : memref<1x128xf32, #tpu.memory_space<vmem>>, vector<1x128xf32>
    %2 = vector.broadcast %1 : vector<1x128xf32> to vector<16x128xf32>
    %3 = arith.mulf %0, %2 : vector<16x128xf32>
    %c0_3 = arith.constant 0 : index
    %c0_4 = arith.constant 0 : index
    %4 = vector.load %arg3[%c0_3, %c0_4] : memref<16x128xf32, #tpu.memory_space<vmem>>, vector<16x128xf32>
    tpu.vector_store %arg3[%c0_3, %c0_4], %3 {strides = array<i32>} : memref<16x128xf32, #tpu.memory_space<vmem>>, vector<16x128xf32>,
    return
  }
  func.func @transform_0(%arg0: i32) -> (i32, i32) {
    %c0_i32 = arith.constant 0 : i32
    %c0_i32_0 = arith.constant 0 : i32
    %c0_i32_1 = arith.constant 0 : i32
    return %c0_i32, %c0_i32_0 : i32, i32
  }
  func.func @transform_1(%arg0: i32) -> (i32, i32) {
    %c0_i32 = arith.constant 0 : i32
    %c0_i32_0 = arith.constant 0 : i32
    return %arg0, %c0_i32 : i32, i32
  }
  func.func @transform_2(%arg0: i32) -> (i32, i32) {
    %c0_i32 = arith.constant 0 : i32
    %c0_i32_0 = arith.constant 0 : i32
    return %arg0, %c0_i32 : i32, i32
  }
}

</mosaic_0001>

<llo_original>
// kernel: tpu_custom_call.1
$region0: #{tpu_custom_call.1}
  #allocation0 [shape = 'u32[]', space=smem, size = 0x4, offset = 0x4, fixed_abs, tag = 'smem constant byte address 0x4 - core index']
  #allocation1 [shape = 'u32[72,128]{1,0:T(1,128)}', space=vmem, size = 0x9000, scoped, tag = 'internal scratch']
  %s0 = inlined_call_operand.hbm [shape: f32[1,128], index: 0, kind: input, shape index: {}]
  %s1 = inlined_call_operand.hbm [shape: f32[32,128], index: 1, kind: input, shape index: {}]
  %s2 = inlined_call_operand.hbm [shape: f32[32,128], index: 2, kind: output, shape index: {}]
  %s3 = sld [smem:[#allocation0]]
  $region49: #{tpu_custom_call.1} parent=0
    _
  %s5 = ssub.s32 1, %s3
  %s6 = scalar_select 0, %s5, %s3
  $region1: #{tpu_custom_call.1} parent=0
    #allocation2 [shape = 'u8[512]{0}', space=vmem, size = 0x400, scoped, tag = 'input window, operand 0, single buffered']
    #allocation3 [shape = 's32[2]{0}', space=sflag, size = 0x8, scoped, tag = 'scoped memory for tpu_custom_call.1']
    #allocation4 [shape = 's32[2]{0}', space=sflag, size = 0x8, scoped, tag = 'scoped memory for tpu_custom_call.1']
    #allocation5 [shape = 'u8[16384]{0}', space=vmem, size = 0x4000, scoped, tag = 'input window, operand 1']
    #allocation6 [shape = 's32[2]{0}', space=sflag, size = 0x8, scoped, tag = 'scoped memory for tpu_custom_call.1']
    #allocation7 [shape = 'u8[16384]{0}', space=vmem, size = 0x4000, scoped, tag = 'output window, operand 0']
    %7 = vsyncpa [#allocation3], 0
    %8 = vsyncpa [#allocation6], 0
    %s9 = scalar_lea.sflag [#allocation6], 1
    %10 = vsyncpa %s9, 0
    %11 = vsyncpa [#allocation4], 0
    %s12 = scalar_lea.sflag [#allocation4], 1
    %13 = vsyncpa %s12, 0
    loop: start=0, step=1, limit=4
    $region2: #{tpu_custom_call.1} parent=1 // loop_pre_header
      _
    $region3: #{tpu_custom_call.1} parent=1 // loop_header
      %s15 = sphi 0, %s19
      %p16 = scmp.ge.s32.totalorder %s15, 4
      %s23 = sphi 0, %s23
      %s25 = sphi 0, %s23
      %s26 = sphi 0, %s25
      %s40 = sphi 0, %s26
      %s46 = sphi 0, %s48
      %s49 = sphi 0, %s46
      %s50 = sphi 0, %s49
      %s66 = sphi 0, %s50
      %s72 = sphi 0, %s74
      %s75 = sphi 0, %s72
      %s76 = sphi 0, %s75
      %s92 = sphi 0, %s76
    $region4: #{tpu_custom_call.1} parent=1 // loop_header_branch
      %18 = sbr.rel (%p16) target = $region8
    $region5: #{tpu_custom_call.1} parent=1 // loop_body
      %s20 = ssub.s32 %s15, 1
      %s21 = ssub.s32 %s15, 2
      %s22 = sadd.s32 %s15, 1
      %s24 = sadd.s32 %s23, 1
      %p27 = scmp.eq.s32.totalorder %s15, 1
      %p28 = scmp.ne.s32.totalorder %s23, %s25
      %p29 = scmp.eq.s32.totalorder %s15, 0
      %p30 = por %p28, %p29
      %p31 = scmp.ne.s32.totalorder %s23, %s25
      %p32 = scmp.eq.s32.totalorder %s20, 1
      %p33 = por %p31, %p32
      %p34 = scmp.ne.s32.totalorder %s25, %s26
      %p35 = scmp.eq.s32.totalorder %s20, 0
      %p36 = por %p34, %p35
      %p37 = scmp.ne.s32.totalorder %s25, %s26
      %p38 = scmp.eq.s32.totalorder %s21, 1
      %p39 = por %p37, %p38
      %p41 = scmp.ne.s32.totalorder %s26, %s40
      %p42 = scmp.eq.s32.totalorder %s21, 0
      %p43 = por %p41, %p42
      %s44 = ssub.s32 %s15, %s22
      %p45 = scmp.eq.s32.totalorder %s44, 0
      %s47 = sadd.s32 %s46, 1
      %s48 = scalar_select %p45, %s46, %s47
      %p51 = pneg %p45
      %p52 = scmp.eq.s32.totalorder %s15, 1
      %p53 = por %p51, %p52
      %p54 = scmp.ne.s32.totalorder %s46, %s49
      %p55 = scmp.eq.s32.totalorder %s15, 0
      %p56 = por %p54, %p55
      %p57 = scmp.ne.s32.totalorder %s46, %s49
      %p58 = scmp.eq.s32.totalorder %s20, 1
      %p59 = por %p57, %p58
      %p60 = scmp.ne.s32.totalorder %s49, %s50
      %p61 = scmp.eq.s32.totalorder %s20, 0
      %p62 = por %p60, %p61
      %p63 = scmp.ne.s32.totalorder %s49, %s50
      %p64 = scmp.eq.s32.totalorder %s21, 1
      %p65 = por %p63, %p64
      %p67 = scmp.ne.s32.totalorder %s50, %s66
      %p68 = scmp.eq.s32.totalorder %s21, 0
      %p69 = por %p67, %p68
      %s70 = ssub.s32 %s15, %s22
      %p71 = scmp.eq.s32.totalorder %s70, 0
      %s73 = sadd.s32 %s72, 1
      %s74 = scalar_select %p71, %s72, %s73
      %p77 = pneg %p71
      %p78 = scmp.eq.s32.totalorder %s15, 1
      %p79 = por %p77, %p78
      %p80 = scmp.ne.s32.totalorder %s72, %s75
      %p81 = scmp.eq.s32.totalorder %s15, 0
      %p82 = por %p80, %p81
      %p83 = scmp.ne.s32.totalorder %s72, %s75
      %p84 = scmp.eq.s32.totalorder %s20, 1
      %p85 = por %p83, %p84
      %p86 = scmp.ne.s32.totalorder %s75, %s76
      %p87 = scmp.eq.s32.totalorder %s20, 0
      %p88 = por %p86, %p87
      %p89 = scmp.ne.s32.totalorder %s75, %s76
      %p90 = scmp.eq.s32.totalorder %s21, 1
      %p91 = por %p89, %p90
      %p93 = scmp.ne.s32.totalorder %s76, %s92
      %p94 = scmp.eq.s32.totalorder %s21, 0
      %p95 = por %p93, %p94
      %p96 = scmp.le.s32.totalorder 1, %s15
      %p97 = scmp.lt.s32.totalorder %s15, 3
      %p98 = pnand %p96, %p97
      %p99 = pneg %p98
      // Predicated region
      $region9: #{tpu_custom_call.1} parent=5 // pred_check
        _
      $region10: #{tpu_custom_call.1} parent=5 // pred_check_branch
        %101 = sbr.rel (%p98) target = $region12
      $region11: #{tpu_custom_call.1} parent=5 // pred_region
        %s102 = ssub.s32 %s15, 1
        // Predicated region
        $region13: #{tpu_custom_call.1} parent=11 // pred_check
          %p103 = pneg %p36
        $region14: #{tpu_custom_call.1} parent=11 // pred_check_branch
          %105 = sbr.rel (%p103) target = $region16
        $region15: #{tpu_custom_call.1} parent=11 // pred_region
          %107 = vsyncadd [#allocation3], 0
          %s109 = sshll.u32 %s0, 4
          %s110 = int_to_ptr.hbm [resolvable:$true] %s109
          %s111 = sshll.u32 [#allocation2], 4
          %s112 = int_to_ptr.vmem [resolvable:$true] %s111
          %114 = dma.hbm_to_vmem [thread:$0]  %s110, 16, %s112, [#allocation3]
        $region16: #{tpu_custom_call.1} parent=11 // pred_fallthru
          _
      $region12: #{tpu_custom_call.1} parent=5 // pred_fallthru
        _
      %p115 = scmp.lt.s32.totalorder %s15, 2
      // Predicated region
      $region17: #{tpu_custom_call.1} parent=5 // pred_check
        %p116 = pneg %p115
      $region18: #{tpu_custom_call.1} parent=5 // pred_check_branch
        %118 = sbr.rel (%p116) target = $region20
      $region19: #{tpu_custom_call.1} parent=5 // pred_region
        // Predicated region
        $region21: #{tpu_custom_call.1} parent=19 // pred_check
          %p119 = pneg %p56
        $region22: #{tpu_custom_call.1} parent=19 // pred_check_branch
          %121 = sbr.rel (%p119) target = $region24
        $region23: #{tpu_custom_call.1} parent=19 // pred_region
          %s122 = sand.u32 %s46, 1
          %s123 = scalar_lea.sflag [#allocation6], %s122
          %s124 = sand.u32 %s46, 1
          %s125 = smul.addr %s124, 16
          %s126 = scalar_lea.vmem [#allocation5], %s125
          %s127 = smul.u32 2, %s15
          %129 = vsyncadd %s123, 0
          %s130 = smul.addr %s127, 8
          %s131 = scalar_lea.hbm %s1, %s130
          %s132 = sshll.u32 %s131, 4
          %s133 = int_to_ptr.hbm [resolvable:$true] %s132
          %s134 = sshll.u32 %s126, 4
          %s135 = int_to_ptr.vmem [resolvable:$true] %s134
          %140 = dma.hbm_to_vmem [thread:$0]  %s133, 256, %s135, %s123, 128, 128, 8
        $region24: #{tpu_custom_call.1} parent=19 // pred_fallthru
          _
      $region20: #{tpu_custom_call.1} parent=5 // pred_fallthru
        _
      %p141 = scmp.le.s32.totalorder 1, %s15
      %p142 = scmp.lt.s32.totalorder %s15, 3
      %p143 = pnand %p141, %p142
      %p144 = pneg %p143
      // Predicated region
      $region25: #{tpu_custom_call.1} parent=5 // pred_check
        _
      $region26: #{tpu_custom_call.1} parent=5 // pred_check_branch
        %146 = sbr.rel (%p143) target = $region28
      $region27: #{tpu_custom_call.1} parent=5 // pred_region
        %s147 = ssub.s32 %s15, 1
        // Predicated region
        $region29: #{tpu_custom_call.1} parent=27 // pred_check
          %p148 = pneg %p36
        $region30: #{tpu_custom_call.1} parent=27 // pred_check_branch
          %150 = sbr.rel (%p148) target = $region32
        $region31: #{tpu_custom_call.1} parent=27 // pred_region
          %152 = dma.done [#allocation3], 16
        $region32: #{tpu_custom_call.1} parent=27 // pred_fallthru
          _
        %s153 = sand.u32 %s49, 1
        %s154 = scalar_lea.sflag [#allocation6], %s153
        %s155 = sand.u32 %s49, 1
        %s156 = smul.addr %s155, 16
        %s157 = scalar_lea.vmem [#allocation5], %s156
        // Predicated region
        $region33: #{tpu_custom_call.1} parent=27 // pred_check
          %p158 = pneg %p62
        $region34: #{tpu_custom_call.1} parent=27 // pred_check_branch
          %160 = sbr.rel (%p158) target = $region36
        $region35: #{tpu_custom_call.1} parent=27 // pred_region
          %162 = dma.done %s154, 256
        $region36: #{tpu_custom_call.1} parent=27 // pred_fallthru
          _
        %p163 = pneg %p36
        %p164 = pneg %p33
        %s165 = sand.u32 %s49, 1
        %s166 = scalar_lea.sflag [#allocation6], %s165
        %s167 = sand.u32 %s49, 1
        %s168 = smul.addr %s167, 16
        %s169 = scalar_lea.vmem [#allocation5], %s168
        %p170 = pneg %p62
        %p171 = pneg %p59
        %p172 = pneg %p88
        %p173 = pneg %p85
        %s174 = sand.u32 %s75, 1
        %s175 = scalar_lea.sflag [#allocation4], %s174
        %s176 = sand.u32 %s75, 1
        %s177 = smul.addr %s176, 16
        %s178 = scalar_lea.vmem [#allocation7], %s177
        %s179 = smul.u32 2, %s20
        %s180 = smul.u32 2, %s20
        %v181 = vld [vmem:[%s157] sm:$0xff]
        %v182 = vld [vmem:[%s157 + $0x8] sm:$0xff]
        %v183 = vld [vmem:[#allocation2] sm:$0x1]
        %v185 = vperm.slane %v183, 0
        %v187 = vmul.f32 %v181, %v185
        %v188 = vmul.f32 %v182, %v185
        %189 = vst [vmem:[%s178] sm:$0xff] %v187
        %190 = vst [vmem:[%s178 + $0x8] sm:$0xff] %v188
        %s191 = sand.u32 %s75, 1
        %s192 = scalar_lea.sflag [#allocation4], %s191
        %s193 = sand.u32 %s75, 1
        %s194 = smul.addr %s193, 16
        %s195 = scalar_lea.vmem [#allocation7], %s194
        // Predicated region
        $region37: #{tpu_custom_call.1} parent=27 // pred_check
          %p196 = pneg %p85
        $region38: #{tpu_custom_call.1} parent=27 // pred_check_branch
          %198 = sbr.rel (%p196) target = $region40
        $region39: #{tpu_custom_call.1} parent=27 // pred_region
          %s199 = smul.u32 2, %s20
          %201 = vsyncadd %s192, 0
          %s202 = smul.addr %s199, 8
          %s203 = scalar_lea.hbm %s2, %s202
          %s204 = sshll.u32 %s195, 4
          %s205 = int_to_ptr.vmem [resolvable:$true] %s204
          %s206 = sshll.u32 %s203, 4
          %s207 = int_to_ptr.hbm [resolvable:$true] %s206
          %212 = dma.vmem_to_hbm [thread:$0]  %s205, 256, %s207, %s192, 128, 128, 8
        $region40: #{tpu_custom_call.1} parent=27 // pred_fallthru
          _
      $region28: #{tpu_custom_call.1} parent=5 // pred_fallthru
        _
      %p213 = scmp.le.s32.totalorder 2, %s15
      // Predicated region
      $region41: #{tpu_custom_call.1} parent=5 // pred_check
        %p214 = pneg %p213
      $region42: #{tpu_custom_call.1} parent=5 // pred_check_branch
        %216 = sbr.rel (%p214) target = $region44
      $region43: #{tpu_custom_call.1} parent=5 // pred_region
        %s217 = ssub.s32 %s15, 2
        // Predicated region
        $region45: #{tpu_custom_call.1} parent=43 // pred_check
          %p218 = pneg %p91
        $region46: #{tpu_custom_call.1} parent=43 // pred_check_branch
          %220 = sbr.rel (%p218) target = $region48
        $region47: #{tpu_custom_call.1} parent=43 // pred_region
          %s221 = sand.u32 %s76, 1
          %s222 = scalar_lea.sflag [#allocation4], %s221
          %s223 = sand.u32 %s76, 1
          %s224 = smul.addr %s223, 16
          %s225 = scalar_lea.vmem [#allocation7], %s224
          %227 = dma.done %s222, 256
        $region48: #{tpu_custom_call.1} parent=43 // pred_fallthru
          _
      $region44: #{tpu_custom_call.1} parent=5 // pred_fallthru
        _
    $region6: #{tpu_custom_call.1} parent=1 // loop_footer
      %s19 = sadd.s32 1, %s15
    $region7: #{tpu_custom_call.1} parent=1 // loop_footer_branch
      %14 = sbr.rel target = $region3
    $region8: #{tpu_custom_call.1} parent=1 // loop_exit
      _
    %228 = vsyncpa [#allocation3], 1
    %s229 = scalar_lea.sflag [#allocation3], 1
    %230 = vsyncpa %s229, 1
    %231 = vsyncpa [#allocation6], 1
    %s232 = scalar_lea.sflag [#allocation6], 1
    %233 = vsyncpa %s232, 1
    %234 = vsyncpa [#allocation4], 1
    %s235 = scalar_lea.sflag [#allocation4], 1
    %236 = vsyncpa %s235, 1

</llo_original>
